<compile_context>
chip_gen: v7x
topology: tpu7x:2x2x1
jax: 0.10.0
libtpu: 0.0.40
codegen_flags: <defaults>
</compile_context>

<pallas_src>
import jax
import jax.numpy as jnp
from jax.experimental import pallas as pl
from jax.experimental.pallas import tpu as pltpu

INPUT_SIZE = 2
HIDDEN_SIZE = 2
OUTPUT_SIZE = 1

LANE = 128
MAX_TB = 32768          # max lanes (samples) per grid step


def _cdiv(a, b):
    return -(-a // b)


def mlp_kernel(p_ref, x_ref, o_ref):
    """p_ref: (9,) f32 in SMEM:
           [w1[0,0], w1[0,1], w1[1,0], w1[1,1], b1[0], b1[1], w2[0,0], w2[0,1], b2[0]]
       x_ref: (2, TB) f32 in VMEM -- row h = input feature h, batch on lanes.
       o_ref: (1, TB) f32 in VMEM -- row 0 = fc2 output, batch on lanes."""
    x0 = x_ref[0:1, :]                                   # (1, TB)
    x1 = x_ref[1:2, :]                                   # (1, TB)

    # fc1: two hidden units, each a scalar-broadcast FMA chain on the VPU.
    z0 = p_ref[0] * x0 + p_ref[1] * x1 + p_ref[4]
    z1 = p_ref[2] * x0 + p_ref[3] * x1 + p_ref[5]

    # Exact sigmoid: exp rides the (idle) EUP slot; the divide is free under
    # the DMA-bound roofline, so no approx reciprocal is needed.
    h0 = 1.0 / (1.0 + jnp.exp(-z0))
    h1 = 1.0 / (1.0 + jnp.exp(-z1))

    # fc2: single output unit; lane-dense (1, TB) store (every lane meaningful).
    o_ref[...] = p_ref[6] * h0 + p_ref[7] * h1 + p_ref[8]


def _choose_tiling(batch):
    """Pick (tb, bp): tb = lanes per grid step (multiple of 128), bp = padded batch.

    - >=2 grid steps whenever the batch spans >=2 lane-blocks, so
      dimension_semantics=("parallel",) actually shards across v7x's two TCs.
    - near-equal split in 128-lane blocks bounds ragged-batch padding waste.
    - tb capped at MAX_TB lanes; even double-buffered in+out this is ~1 MiB of
      VMEM, well under v5e/v6e (128 MiB) and v7x (64 MiB) budgets.
    """
    bl_blocks = _cdiv(batch, LANE)                # 128-lane blocks needed
    max_blocks = MAX_TB // LANE
    min_steps = 2 if bl_blocks >= 2 else 1
    steps = max(min_steps, _cdiv(bl_blocks, max_blocks))
    tb_blocks = _cdiv(bl_blocks, steps)           # near-equal split, in blocks
    tb = tb_blocks * LANE
    bp = _cdiv(bl_blocks, tb_blocks) * tb         # padded batch, lanes
    return tb, bp


def pack_params(w1, b1, w2, b2):
    """Flatten the 9 parameter scalars into a single (9,) f32 vector (goes to SMEM)."""
    return jnp.concatenate(
        [w1.reshape(-1), b1.reshape(-1), w2.reshape(-1), b2.reshape(-1)]
    ).astype(jnp.float32)


def mlp_forward(x, w1, b1, w2, b2):
    """x: (batch, 2). Weights use the PyTorch nn.Linear convention:
       w1 (hidden, in), b1 (hidden,), w2 (out, hidden), b2 (out,)."""
    batch = x.shape[0]
    tb, bp = _choose_tiling(batch)

    # Transposed, lane-aligned input slab: (2, bp).  Padding work is only
    # 8 B/sample (vs. the old (Bp,128) slab), so no input-fusion tricks needed.
    x_t = jnp.zeros((INPUT_SIZE, bp), jnp.float32).at[:, :batch].set(x.T)
    params = pack_params(w1, b1, w2, b2)

    out = pl.pallas_call(
        mlp_kernel,
        out_shape=jax.ShapeDtypeStruct((OUTPUT_SIZE, bp), jnp.float32),
        grid=(bp // tb,),
        in_specs=[
            pl.BlockSpec(memory_space=pltpu.MemorySpace.SMEM),   # 9 scalars, resident
            pl.BlockSpec((INPUT_SIZE, tb), lambda i: (0, i)),    # streamed batch tile
        ],
        out_specs=pl.BlockSpec((OUTPUT_SIZE, tb), lambda i: (0, i)),
        compiler_params=pltpu.CompilerParams(
            dimension_semantics=("parallel",)),
    )(params, x_t)

    # Trivial (1, batch) slice -> (batch, 1); padded lanes are dropped here.
    return out[0, :batch].reshape(batch, OUTPUT_SIZE)


def init_params(key):
    # Deterministic synthetic init mimicking nn.Linear's U(-1/sqrt(fan_in), +).
    k1, k2, k3, k4 = jax.random.split(key, 4)
    bound1 = 1.0 / jnp.sqrt(jnp.float32(INPUT_SIZE))
    bound2 = 1.0 / jnp.sqrt(jnp.float32(HIDDEN_SIZE))
    w1 = jax.random.uniform(k1, (HIDDEN_SIZE, INPUT_SIZE), jnp.float32, -bound1, bound1)
    b1 = jax.random.uniform(k2, (HIDDEN_SIZE,), jnp.float32, -bound1, bound1)
    w2 = jax.random.uniform(k3, (OUTPUT_SIZE, HIDDEN_SIZE), jnp.float32, -bound2, bound2)
    b2 = jax.random.uniform(k4, (OUTPUT_SIZE,), jnp.float32, -bound2, bound2)
    return w1, b1, w2, b2


def mlp_reference(x, w1, b1, w2, b2):
    h = jax.nn.sigmoid(x @ w1.T + b1)
    return h @ w2.T + b2


if __name__ == "__main__":
    key = jax.random.PRNGKey(0)
    kp, kx = jax.random.split(key)
    w1, b1, w2, b2 = init_params(kp)

    # The classic XOR truth-table inputs (batch=4, input_size=2).
    x = jnp.array([[0.0, 0.0],
                   [0.0, 1.0],
                   [1.0, 0.0],
                   [1.0, 1.0]], dtype=jnp.float32)

    out = jax.block_until_ready(mlp_forward(x, w1, b1, w2, b2))
    ref = mlp_reference(x, w1, b1, w2, b2)
    assert out.shape == (4, OUTPUT_SIZE)
    assert jnp.allclose(out, ref, atol=1e-5, rtol=1e-5), (out, ref)

    # Ragged, multi-tile path: 300 samples -> 2 grid steps of 256 lanes each,
    # exercising the parallel grid split and padded trailing lanes.
    xb = jax.random.uniform(kx, (300, INPUT_SIZE), dtype=jnp.float32)
    outb = jax.block_until_ready(mlp_forward(xb, w1, b1, w2, b2))
    refb = mlp_reference(xb, w1, b1, w2, b2)
    assert outb.shape == (300, OUTPUT_SIZE)
    assert jnp.allclose(outb, refb, atol=1e-5, rtol=1e-5)

    print("KERNEL_OK")
</pallas_src>

<mosaic_0001>
module attributes {stable_mosaic.version = 11 : i64} {
  func.func @mlp_kernel(%arg0: i32, %arg1: memref<9xf32, #tpu.memory_space<smem>>, %arg2: memref<2x128xf32, #tpu.memory_space<vmem>>, %arg3: memref<1x128xf32, #tpu.memory_space<vmem>>) attributes {dimension_semantics = [#tpu.dimension_semantics<parallel>], iteration_bounds = array<i64: 1>, scalar_prefetch = 0 : i64, scratch_operands = 0 : i64, tpu.core_type = #tpu.core_type<tc>, window_params = [{transform_indices = @transform_0, window_bounds = array<i64: 9>}, {transform_indices = @transform_1, window_bounds = array<i64: 2, 128>}, {transform_indices = @transform_2, window_bounds = array<i64: 1, 128>}]} {
    %c0 = arith.constant 0 : index
    %c0_0 = arith.constant 0 : index
    %0 = vector.load %arg2[%c0, %c0_0] : memref<2x128xf32, #tpu.memory_space<vmem>>, vector<1x128xf32>
    %c1 = arith.constant 1 : index
    %c0_1 = arith.constant 0 : index
    %1 = vector.load %arg2[%c1, %c0_1] : memref<2x128xf32, #tpu.memory_space<vmem>>, vector<1x128xf32>
    %c0_2 = arith.constant 0 : index
    %2 = memref.load %arg1[%c0_2] : memref<9xf32, #tpu.memory_space<smem>>
    %3 = vector.broadcast %2 : f32 to vector<1x128xf32>
    %4 = arith.mulf %3, %0 : vector<1x128xf32>
    %c1_3 = arith.constant 1 : index
    %5 = memref.load %arg1[%c1_3] : memref<9xf32, #tpu.memory_space<smem>>
    %6 = vector.broadcast %5 : f32 to vector<1x128xf32>
    %7 = arith.mulf %6, %1 : vector<1x128xf32>
    %8 = arith.addf %4, %7 : vector<1x128xf32>
    %c4 = arith.constant 4 : index
    %9 = memref.load %arg1[%c4] : memref<9xf32, #tpu.memory_space<smem>>
    %10 = vector.broadcast %9 : f32 to vector<1x128xf32>
    %11 = arith.addf %8, %10 : vector<1x128xf32>
    %c2 = arith.constant 2 : index
    %12 = memref.load %arg1[%c2] : memref<9xf32, #tpu.memory_space<smem>>
    %13 = vector.broadcast %12 : f32 to vector<1x128xf32>
    %14 = arith.mulf %13, %0 : vector<1x128xf32>
    %c3 = arith.constant 3 : index
    %15 = memref.load %arg1[%c3] : memref<9xf32, #tpu.memory_space<smem>>
    %16 = vector.broadcast %15 : f32 to vector<1x128xf32>
    %17 = arith.mulf %16, %1 : vector<1x128xf32>
    %18 = arith.addf %14, %17 : vector<1x128xf32>
    %c5 = arith.constant 5 : index
    %19 = memref.load %arg1[%c5] : memref<9xf32, #tpu.memory_space<smem>>
    %20 = vector.broadcast %19 : f32 to vector<1x128xf32>
    %21 = arith.addf %18, %20 : vector<1x128xf32>
    %cst = arith.constant 0.000000e+00 : f32
    %22 = vector.broadcast %cst : f32 to vector<1x128xf32>
    %23 = arith.subf %22, %11 : vector<1x128xf32>
    %24 = math.exp %23 : vector<1x128xf32>
    %cst_4 = arith.constant 1.000000e+00 : f32
    %25 = vector.broadcast %cst_4 : f32 to vector<1x128xf32>
    %26 = arith.addf %25, %24 : vector<1x128xf32>
    %cst_5 = arith.constant 1.000000e+00 : f32
    %27 = vector.broadcast %cst_5 : f32 to vector<1x128xf32>
    %28 = arith.divf %27, %26 : vector<1x128xf32>
    %cst_6 = arith.constant 0.000000e+00 : f32
    %29 = vector.broadcast %cst_6 : f32 to vector<1x128xf32>
    %30 = arith.subf %29, %21 : vector<1x128xf32>
    %31 = math.exp %30 : vector<1x128xf32>
    %cst_7 = arith.constant 1.000000e+00 : f32
    %32 = vector.broadcast %cst_7 : f32 to vector<1x128xf32>
    %33 = arith.addf %32, %31 : vector<1x128xf32>
    %cst_8 = arith.constant 1.000000e+00 : f32
    %34 = vector.broadcast %cst_8 : f32 to vector<1x128xf32>
    %35 = arith.divf %34, %33 : vector<1x128xf32>
    %c6 = arith.constant 6 : index
    %36 = memref.load %arg1[%c6] : memref<9xf32, #tpu.memory_space<smem>>
    %37 = vector.broadcast %36 : f32 to vector<1x128xf32>
    %38 = arith.mulf %37, %28 : vector<1x128xf32>
    %c7 = arith.constant 7 : index
    %39 = memref.load %arg1[%c7] : memref<9xf32, #tpu.memory_space<smem>>
    %40 = vector.broadcast %39 : f32 to vector<1x128xf32>
    %41 = arith.mulf %40, %35 : vector<1x128xf32>
    %42 = arith.addf %38, %41 : vector<1x128xf32>
    %c8 = arith.constant 8 : index
    %43 = memref.load %arg1[%c8] : memref<9xf32, #tpu.memory_space<smem>>
    %44 = vector.broadcast %43 : f32 to vector<1x128xf32>
    %45 = arith.addf %42, %44 : vector<1x128xf32>
    %c0_9 = arith.constant 0 : index
    %c0_10 = arith.constant 0 : index
    %46 = vector.load %arg3[%c0_9, %c0_10] : memref<1x128xf32, #tpu.memory_space<vmem>>, vector<1x128xf32>
    tpu.vector_store %arg3[%c0_9, %c0_10], %45 {strides = array<i32>} : memref<1x128xf32, #tpu.memory_space<vmem>>, vector<1x128xf32>,
    return
  }
  func.func @transform_0(%arg0: i32) -> i32 {
    %c0_i32 = arith.constant 0 : i32
    %c0_i32_0 = arith.constant 0 : i32
    return %c0_i32 : i32
  }
  func.func @transform_1(%arg0: i32) -> (i32, i32) {
    %c0_i32 = arith.constant 0 : i32
    %c0_i32_0 = arith.constant 0 : i32
    return %c0_i32, %arg0 : i32, i32
  }
  func.func @transform_2(%arg0: i32) -> (i32, i32) {
    %c0_i32 = arith.constant 0 : i32
    %c0_i32_0 = arith.constant 0 : i32
    return %c0_i32, %arg0 : i32, i32
  }
}

</mosaic_0001>

<llo_original>
// kernel: tpu_custom_call.1
$region0: #{tpu_custom_call.1}
  #allocation0 [shape = 'u32[]', space=smem, size = 0x4, offset = 0x4, fixed_abs, tag = 'smem constant byte address 0x4 - core index']
  #allocation1 [shape = 'u32[144,128]{1,0:T(1,128)}', space=vmem, size = 0x12000, scoped, tag = 'internal scratch']
  %s0 = inlined_call_operand.hbm [shape: f32[9], index: 0, kind: input, shape index: {}]
  %s1 = inlined_call_operand.vmem [shape: f32[2,128], index: 1, kind: input, shape index: {}]
  %s2 = inlined_call_operand.hbm [shape: f32[1,128], index: 2, kind: output, shape index: {}]
  %s3 = sld [smem:[#allocation0]]
  $region22: #{tpu_custom_call.1} parent=0
    _
  %s5 = ssub.s32 1, %s3
  %s6 = scalar_select 0, %s5, %s3
  $region1: #{tpu_custom_call.1} parent=0
    #allocation2 [shape = 'u8[512]{0}', space=smem, size = 0x200, scoped, tag = 'input window, operand 0, single buffered']
    #allocation3 [shape = 's32[1]{0}', space=sflag, size = 0x4, scoped, tag = 'scoped memory for tpu_custom_call.1']
    #allocation4 [shape = 's32[1]{0}', space=sflag, size = 0x4, scoped, tag = 'scoped memory for tpu_custom_call.1']
    #allocation5 [shape = 'u8[512]{0}', space=vmem, size = 0x400, scoped, tag = 'output window, operand 0, single buffered']
    %7 = vsyncpa [#allocation4], 0
    %8 = vsyncpa [#allocation3], 0
    // Predicated region
    $region2: #{tpu_custom_call.1} parent=1 // pred_check
      _
    $region3: #{tpu_custom_call.1} parent=1 // pred_check_branch
      %10 = sbr.rel (0) target = $region5
    $region4: #{tpu_custom_call.1} parent=1 // pred_region
      %s12 = ssub.s32 16, 16
      %13 = vsyncadd [#allocation4], %s12
      %16 = dma.hbm_to_smem %s0, 16, [#allocation2], [#allocation4]
    $region5: #{tpu_custom_call.1} parent=1 // pred_fallthru
      _
    // Predicated region
    $region6: #{tpu_custom_call.1} parent=1 // pred_check
      _
    $region7: #{tpu_custom_call.1} parent=1 // pred_check_branch
      %18 = sbr.rel (0) target = $region9
    $region8: #{tpu_custom_call.1} parent=1 // pred_region
      _
    $region9: #{tpu_custom_call.1} parent=1 // pred_fallthru
      _
    // Predicated region
    $region10: #{tpu_custom_call.1} parent=1 // pred_check
      _
    $region11: #{tpu_custom_call.1} parent=1 // pred_check_branch
      %20 = sbr.rel (0) target = $region13
    $region12: #{tpu_custom_call.1} parent=1 // pred_region
      %21 = dma.done [#allocation4], 16
    $region13: #{tpu_custom_call.1} parent=1 // pred_fallthru
      _
    %22 = sfence
    %v23 = vld [vmem:[%s1] sm:$0x1]
    %v24 = vld [vmem:[%s1 + $0x1] sm:$0x1]
    %s25 = sld [smem:[#allocation2]]
    %v26 = vstv %s25
    %v27 = vmul.f32 %v26, %v23
    %s28 = sld [smem:[#allocation2 + $0x1]]
    %v29 = vstv %s28
    %v30 = vmul.f32 %v29, %v24
    %v31 = vadd.f32 %v27, %v30
    %s32 = sld [smem:[#allocation2 + $0x4]]
    %v33 = vstv %s32
    %v34 = vadd.f32 %v31, %v33
    %s35 = sld [smem:[#allocation2 + $0x2]]
    %v36 = vstv %s35
    %v37 = vmul.f32 %v36, %v23
    %s38 = sld [smem:[#allocation2 + $0x3]]
    %v39 = vstv %s38
    %v40 = vmul.f32 %v39, %v24
    %v41 = vadd.f32 %v37, %v40
    %s42 = sld [smem:[#allocation2 + $0x5]]
    %v43 = vstv %s42
    %v44 = vadd.f32 %v41, %v43
    %v45 = vsub.f32 0.0, %v34
    %v46 = vmul.f32 %v45, 1.442695
    %v47 = vpow.pop %v46
    %v48 = vadd.f32 %v47, 1.0
    %v49 = vrcp.pop %v48
    %v50 = vmul.f32 1.0, %v49
    %v51 = vsub.f32 0.0, %v44
    %v52 = vmul.f32 %v51, 1.442695
    %v53 = vpow.pop %v52
    %v54 = vadd.f32 %v53, 1.0
    %v55 = vrcp.pop %v54
    %v56 = vmul.f32 1.0, %v55
    %s57 = sld [smem:[#allocation2 + $0x6]]
    %v58 = vstv %s57
    %v59 = vmul.f32 %v58, %v50
    %s60 = sld [smem:[#allocation2 + $0x7]]
    %v61 = vstv %s60
    %v62 = vmul.f32 %v61, %v56
    %v63 = vadd.f32 %v59, %v62
    %s64 = sld [smem:[#allocation2 + $0x8]]
    %v65 = vstv %s64
    %v66 = vadd.f32 %v63, %v65
    %67 = vst [vmem:[#allocation5] sm:$0x1] %v66
    // Predicated region
    $region14: #{tpu_custom_call.1} parent=1 // pred_check
      _
    $region15: #{tpu_custom_call.1} parent=1 // pred_check_branch
      %69 = sbr.rel (0) target = $region17
    $region16: #{tpu_custom_call.1} parent=1 // pred_region
      %s71 = ssub.s32 16, 16
      %72 = vsyncadd [#allocation3], %s71
      %s74 = sshll.u32 [#allocation5], 4
      %s75 = int_to_ptr.vmem [resolvable:$true] %s74
      %77 = dma.vmem_to_hbm [thread:$0]  %s75, 16, %s2, [#allocation3]
    $region17: #{tpu_custom_call.1} parent=1 // pred_fallthru
      _
    // Predicated region
    $region18: #{tpu_custom_call.1} parent=1 // pred_check
      _
    $region19: #{tpu_custom_call.1} parent=1 // pred_check_branch
      %79 = sbr.rel (0) target = $region21
    $region20: #{tpu_custom_call.1} parent=1 // pred_region
      %80 = dma.done [#allocation3], 16
    $region21: #{tpu_custom_call.1} parent=1 // pred_fallthru
      _
    %81 = vsyncpa [#allocation3], 1
    %82 = vsyncpa [#allocation4], 1

</llo_original>
